<compile_context>
chip_gen: v7x
topology: tpu7x:2x2x1
jax: 0.10.0
libtpu: 0.0.40
codegen_flags: <defaults>
</compile_context>

<pallas_src>
import jax
import jax.numpy as jnp
from jax import lax
from jax.experimental import pallas as pl
from jax.experimental.pallas import tpu as pltpu


def _make_embedding_bag_kernel(feature_size, batch_size, dim, block_rows,
                               max_pool, nnz):
    """Builds the kernel with all shape/config parameters bound statically."""
    F, B, D, TB, L = feature_size, batch_size, dim, block_rows, max_pool

    def kernel(offsets_ref, values_ref, table_ref, out_ref):
        # out_ref block: (TB, F*D), lane-dense.
        batch_base = pl.program_id(0) * TB

        def per_row(r, carry):
            b = batch_base + r
            for f in range(F):                       # static unroll over features
                bag = f * B + b                      # KJT feature-major bag id
                start = offsets_ref[bag]             # SMEM scalar reads
                end = offsets_ref[bag + 1]
                acc = jnp.zeros((1, D), jnp.float32)  # register accumulator
                for j in range(L):                   # static masked unroll
                    pos = start + j
                    valid = pos < end
                    safe_pos = jnp.minimum(pos, nnz - 1)
                    row_idx = values_ref[safe_pos]   # SMEM scalar read
                    row = table_ref[pl.ds(row_idx, 1), :].astype(jnp.float32)
                    acc = acc + jnp.where(valid, row, 0.0)
                # One store per bag into the lane-dense output tile.
                out_ref[pl.ds(r, 1), pl.ds(f * D, D)] = acc.astype(out_ref.dtype)
            return carry

        lax.fori_loop(0, TB, per_row, 0)

    return kernel


def _pick_block_rows(batch_size):
    """Largest multiple-of-8 divisor of B that is <= 128 (prefer >=2 grid steps)."""
    candidates = [c for c in range(8, min(batch_size, 128) + 1, 8)
                  if batch_size % c == 0]
    if not candidates:
        # Full-batch block: block dim == full array dim is always legal.
        return batch_size
    multi = [c for c in candidates if batch_size // c >= 2]
    return max(multi) if multi else max(candidates)


def fused_sparse_forward(values, offsets, table, feature_size, batch_size,
                         max_pooling_len):
    """EmbeddingBag(sum) over the fused table + DLRM shape hook.

    values:          int32 [nnz]       indices into the fused table
    offsets:         int32 [F*B + 1]   include_last_offset=True offsets
                                       (feature-major bag order, torchrec KJT)
    table:           f32   [num_emb,D] fused embedding table
    max_pooling_len: int               static upper bound on bag length
    returns:         f32   [B, F, D]
    """
    F, B = feature_size, batch_size
    num_emb, dim = table.shape
    nnz = int(values.shape[0])
    out_cols = F * dim

    if nnz == 0 or max_pooling_len == 0:
        return jnp.zeros((B, F, dim), table.dtype)

    TB = _pick_block_rows(B)
    grid = (B // TB,)

    # VMEM budget: resident table (x2 for potential double-buffering) + output
    # double-buffer + margin.  Raised explicitly so large tables don't trip
    # v5e's 16 MiB default scoped-VMEM limit.
    itemsize = jnp.dtype(table.dtype).itemsize
    vmem_needed = (2 * num_emb * dim * itemsize
                   + 2 * TB * out_cols * itemsize + (4 << 20))
    vmem_limit = int(min(max(vmem_needed, 16 << 20), 128 << 20))

    kernel = _make_embedding_bag_kernel(F, B, dim, TB, int(max_pooling_len), nnz)

    flat = pl.pallas_call(
        kernel,
        out_shape=jax.ShapeDtypeStruct((B, out_cols), table.dtype),
        grid_spec=pltpu.PrefetchScalarGridSpec(
            num_scalar_prefetch=2,                  # offsets, values -> SMEM
            grid=grid,
            in_specs=[
                # Full fused table resident in VMEM (constant block index).
                pl.BlockSpec((num_emb, dim), lambda i, off, vals: (0, 0)),
            ],
            # Lane-dense output tile: (TB, F*D).
            out_specs=pl.BlockSpec((TB, out_cols), lambda i, off, vals: (i, 0)),
        ),
        compiler_params=pltpu.CompilerParams(
            dimension_semantics=("parallel",),      # batch blocks independent
            vmem_limit_bytes=vmem_limit,
        ),
    )(offsets, values, table)

    # sparse_embedding_shape_hook equivalent: layout is already (B, F*D), so
    # only a free reshape is needed (no transpose).
    return flat.reshape(B, F, dim)


def _reference(values, offsets, table, feature_size, batch_size):
    """Pure-JAX reference (segment-sum embedding bag + shape hook)."""
    num_bags = feature_size * batch_size
    nnz = values.shape[0]
    if nnz == 0:
        return jnp.zeros((batch_size, feature_size, table.shape[1]), table.dtype)
    bag_ids = jnp.searchsorted(offsets[1:], jnp.arange(nnz), side="right")
    gathered = table[values]
    flat = jax.ops.segment_sum(gathered, bag_ids, num_segments=num_bags)
    return jnp.transpose(
        flat.reshape(feature_size, batch_size, table.shape[1]), (1, 0, 2))


if __name__ == "__main__":
    # Small, deterministic synthetic setup consistent with the module __init__.
    num_embeddings_per_feature = [100, 200, 150, 50]   # 4 sparse features
    feature_size = len(num_embeddings_per_feature)
    num_emb = sum(num_embeddings_per_feature)          # fused table rows = 500
    embedding_dim = 32
    batch_size = 8
    num_bags = feature_size * batch_size

    key = jax.random.PRNGKey(0)
    k_tab, k_len, k_val = jax.random.split(key, 3)

    # Fused embedding table (deterministic init, no checkpoint).
    table = (jax.random.normal(k_tab, (num_emb, embedding_dim), jnp.float32)
             * 0.01)

    # Jagged bag lengths in [0, 3] (empty bags allowed), include_last_offset,
    # feature-major bag order (matches torchrec KJT offsets layout).
    lengths = jax.random.randint(k_len, (num_bags,), 0, 4, dtype=jnp.int32)
    offsets = jnp.concatenate(
        [jnp.zeros((1,), jnp.int32), jnp.cumsum(lengths, dtype=jnp.int32)])
    nnz = int(offsets[-1])
    values = jax.random.randint(k_val, (nnz,), 0, num_emb, dtype=jnp.int32)
    max_pool = int(jnp.max(lengths)) if num_bags > 0 else 0

    out = fused_sparse_forward(values, offsets, table, feature_size,
                               batch_size, max_pool)
    out = jax.block_until_ready(out)
    assert out.shape == (batch_size, feature_size, embedding_dim), out.shape

    ref = _reference(values, offsets, table, feature_size, batch_size)
    assert jnp.allclose(out, ref, atol=1e-5, rtol=1e-5), "mismatch vs reference"

    print("KERNEL_OK")
</pallas_src>

<mosaic_0001>
module attributes {stable_mosaic.version = 11 : i64} {
  func.func @kernel(%arg0: i32, %arg1: memref<33xi32, #tpu.memory_space<smem>>, %arg2: memref<51xi32, #tpu.memory_space<smem>>, %arg3: memref<500x32xf32, #tpu.memory_space<vmem>>, %arg4: memref<8x128xf32, #tpu.memory_space<vmem>>) attributes {dimension_semantics = [#tpu.dimension_semantics<parallel>], iteration_bounds = array<i64: 1>, scalar_prefetch = 2 : i64, scratch_operands = 0 : i64, tpu.core_type = #tpu.core_type<tc>, window_params = [{pipeline_mode = #tpu.pipeline_mode<synchronous>, transform_indices = @transform_0, window_bounds = array<i64: 500, 32>}, {transform_indices = @transform_1, window_bounds = array<i64: 8, 128>}]} {
    %c8_i32 = arith.constant 8 : i32
    %0 = arith.muli %arg0, %c8_i32 : i32
    %c0_i32 = arith.constant 0 : i32
    %c8_i32_0 = arith.constant 8 : i32
    %1 = arith.addi %c0_i32, %c8_i32_0 : i32
    %c1_i32 = arith.constant 1 : i32
    scf.for %arg5 = %c0_i32 to %1 step %c1_i32  : i32 {
      %2 = arith.addi %0, %arg5 : i32
      %c0_i32_2 = arith.constant 0 : i32
      %3 = arith.addi %c0_i32_2, %2 : i32
      %4 = arith.index_cast %3 : i32 to index
      %5 = memref.load %arg1[%4] : memref<33xi32, #tpu.memory_space<smem>>
      %c1_i32_3 = arith.constant 1 : i32
      %6 = arith.addi %3, %c1_i32_3 : i32
      %7 = arith.index_cast %6 : i32 to index
      %8 = memref.load %arg1[%7] : memref<33xi32, #tpu.memory_space<smem>>
      %cst = arith.constant 0.000000e+00 : f32
      %9 = vector.broadcast %cst : f32 to vector<1x32xf32>
      %c0_i32_4 = arith.constant 0 : i32
      %10 = arith.addi %5, %c0_i32_4 : i32
      %11 = arith.cmpi slt, %10, %8 : i32
      %c50_i32 = arith.constant 50 : i32
      %12 = arith.minsi %10, %c50_i32 : i32
      %13 = arith.index_cast %12 : i32 to index
      %14 = memref.load %arg2[%13] : memref<51xi32, #tpu.memory_space<smem>>
      %15 = arith.index_cast %14 : i32 to index
      %c0 = arith.constant 0 : index
      %16 = vector.load %arg3[%15, %c0] : memref<500x32xf32, #tpu.memory_space<vmem>>, vector<1x32xf32>
      %cst_5 = arith.constant 0.000000e+00 : f32
      %17 = vector.broadcast %cst_5 : f32 to vector<1x32xf32>
      %18 = arith.select %11, %16, %17 : vector<1x32xf32>
      %19 = arith.addf %9, %18 : vector<1x32xf32>
      %c1_i32_6 = arith.constant 1 : i32
      %20 = arith.addi %5, %c1_i32_6 : i32
      %21 = arith.cmpi slt, %20, %8 : i32
      %c50_i32_7 = arith.constant 50 : i32
      %22 = arith.minsi %20, %c50_i32_7 : i32
      %23 = arith.index_cast %22 : i32 to index
      %24 = memref.load %arg2[%23] : memref<51xi32, #tpu.memory_space<smem>>
      %25 = arith.index_cast %24 : i32 to index
      %c0_8 = arith.constant 0 : index
      %26 = vector.load %arg3[%25, %c0_8] : memref<500x32xf32, #tpu.memory_space<vmem>>, vector<1x32xf32>
      %cst_9 = arith.constant 0.000000e+00 : f32
      %27 = vector.broadcast %cst_9 : f32 to vector<1x32xf32>
      %28 = arith.select %21, %26, %27 : vector<1x32xf32>
      %29 = arith.addf %19, %28 : vector<1x32xf32>
      %c2_i32 = arith.constant 2 : i32
      %30 = arith.addi %5, %c2_i32 : i32
      %31 = arith.cmpi slt, %30, %8 : i32
      %c50_i32_10 = arith.constant 50 : i32
      %32 = arith.minsi %30, %c50_i32_10 : i32
      %33 = arith.index_cast %32 : i32 to index
      %34 = memref.load %arg2[%33] : memref<51xi32, #tpu.memory_space<smem>>
      %35 = arith.index_cast %34 : i32 to index
      %c0_11 = arith.constant 0 : index
      %36 = vector.load %arg3[%35, %c0_11] : memref<500x32xf32, #tpu.memory_space<vmem>>, vector<1x32xf32>
      %cst_12 = arith.constant 0.000000e+00 : f32
      %37 = vector.broadcast %cst_12 : f32 to vector<1x32xf32>
      %38 = arith.select %31, %36, %37 : vector<1x32xf32>
      %39 = arith.addf %29, %38 : vector<1x32xf32>
      %40 = arith.index_cast %arg5 : i32 to index
      %c0_13 = arith.constant 0 : index
      %41 = vector.load %arg4[%40, %c0_13] : memref<8x128xf32, #tpu.memory_space<vmem>>, vector<1x32xf32>
      tpu.vector_store %arg4[%40, %c0_13], %39 {strides = array<i32>} : memref<8x128xf32, #tpu.memory_space<vmem>>, vector<1x32xf32>,
      %c8_i32_14 = arith.constant 8 : i32
      %42 = arith.addi %c8_i32_14, %2 : i32
      %43 = arith.index_cast %42 : i32 to index
      %44 = memref.load %arg1[%43] : memref<33xi32, #tpu.memory_space<smem>>
      %c1_i32_15 = arith.constant 1 : i32
      %45 = arith.addi %42, %c1_i32_15 : i32
      %46 = arith.index_cast %45 : i32 to index
      %47 = memref.load %arg1[%46] : memref<33xi32, #tpu.memory_space<smem>>
      %cst_16 = arith.constant 0.000000e+00 : f32
      %48 = vector.broadcast %cst_16 : f32 to vector<1x32xf32>
      %c0_i32_17 = arith.constant 0 : i32
      %49 = arith.addi %44, %c0_i32_17 : i32
      %50 = arith.cmpi slt, %49, %47 : i32
      %c50_i32_18 = arith.constant 50 : i32
      %51 = arith.minsi %49, %c50_i32_18 : i32
      %52 = arith.index_cast %51 : i32 to index
      %53 = memref.load %arg2[%52] : memref<51xi32, #tpu.memory_space<smem>>
      %54 = arith.index_cast %53 : i32 to index
      %c0_19 = arith.constant 0 : index
      %55 = vector.load %arg3[%54, %c0_19] : memref<500x32xf32, #tpu.memory_space<vmem>>, vector<1x32xf32>
      %cst_20 = arith.constant 0.000000e+00 : f32
      %56 = vector.broadcast %cst_20 : f32 to vector<1x32xf32>
      %57 = arith.select %50, %55, %56 : vector<1x32xf32>
      %58 = arith.addf %48, %57 : vector<1x32xf32>
      %c1_i32_21 = arith.constant 1 : i32
      %59 = arith.addi %44, %c1_i32_21 : i32
      %60 = arith.cmpi slt, %59, %47 : i32
      %c50_i32_22 = arith.constant 50 : i32
      %61 = arith.minsi %59, %c50_i32_22 : i32
      %62 = arith.index_cast %61 : i32 to index
      %63 = memref.load %arg2[%62] : memref<51xi32, #tpu.memory_space<smem>>
      %64 = arith.index_cast %63 : i32 to index
      %c0_23 = arith.constant 0 : index
      %65 = vector.load %arg3[%64, %c0_23] : memref<500x32xf32, #tpu.memory_space<vmem>>, vector<1x32xf32>
      %cst_24 = arith.constant 0.000000e+00 : f32
      %66 = vector.broadcast %cst_24 : f32 to vector<1x32xf32>
      %67 = arith.select %60, %65, %66 : vector<1x32xf32>
      %68 = arith.addf %58, %67 : vector<1x32xf32>
      %c2_i32_25 = arith.constant 2 : i32
      %69 = arith.addi %44, %c2_i32_25 : i32
      %70 = arith.cmpi slt, %69, %47 : i32
      %c50_i32_26 = arith.constant 50 : i32
      %71 = arith.minsi %69, %c50_i32_26 : i32
      %72 = arith.index_cast %71 : i32 to index
      %73 = memref.load %arg2[%72] : memref<51xi32, #tpu.memory_space<smem>>
      %74 = arith.index_cast %73 : i32 to index
      %c0_27 = arith.constant 0 : index
      %75 = vector.load %arg3[%74, %c0_27] : memref<500x32xf32, #tpu.memory_space<vmem>>, vector<1x32xf32>
      %cst_28 = arith.constant 0.000000e+00 : f32
      %76 = vector.broadcast %cst_28 : f32 to vector<1x32xf32>
      %77 = arith.select %70, %75, %76 : vector<1x32xf32>
      %78 = arith.addf %68, %77 : vector<1x32xf32>
      %79 = arith.index_cast %arg5 : i32 to index
      %c32 = arith.constant 32 : index
      %80 = vector.load %arg4[%79, %c32] : memref<8x128xf32, #tpu.memory_space<vmem>>, vector<1x32xf32>
      tpu.vector_store %arg4[%79, %c32], %78 {strides = array<i32>} : memref<8x128xf32, #tpu.memory_space<vmem>>, vector<1x32xf32>,
      %c16_i32 = arith.constant 16 : i32
      %81 = arith.addi %c16_i32, %2 : i32
      %82 = arith.index_cast %81 : i32 to index
      %83 = memref.load %arg1[%82] : memref<33xi32, #tpu.memory_space<smem>>
      %c1_i32_29 = arith.constant 1 : i32
      %84 = arith.addi %81, %c1_i32_29 : i32
      %85 = arith.index_cast %84 : i32 to index
      %86 = memref.load %arg1[%85] : memref<33xi32, #tpu.memory_space<smem>>
      %cst_30 = arith.constant 0.000000e+00 : f32
      %87 = vector.broadcast %cst_30 : f32 to vector<1x32xf32>
      %c0_i32_31 = arith.constant 0 : i32
      %88 = arith.addi %83, %c0_i32_31 : i32
      %89 = arith.cmpi slt, %88, %86 : i32
      %c50_i32_32 = arith.constant 50 : i32
      %90 = arith.minsi %88, %c50_i32_32 : i32
      %91 = arith.index_cast %90 : i32 to index
      %92 = memref.load %arg2[%91] : memref<51xi32, #tpu.memory_space<smem>>
      %93 = arith.index_cast %92 : i32 to index
      %c0_33 = arith.constant 0 : index
      %94 = vector.load %arg3[%93, %c0_33] : memref<500x32xf32, #tpu.memory_space<vmem>>, vector<1x32xf32>
      %cst_34 = arith.constant 0.000000e+00 : f32
      %95 = vector.broadcast %cst_34 : f32 to vector<1x32xf32>
      %96 = arith.select %89, %94, %95 : vector<1x32xf32>
      %97 = arith.addf %87, %96 : vector<1x32xf32>
      %c1_i32_35 = arith.constant 1 : i32
      %98 = arith.addi %83, %c1_i32_35 : i32
      %99 = arith.cmpi slt, %98, %86 : i32
      %c50_i32_36 = arith.constant 50 : i32
      %100 = arith.minsi %98, %c50_i32_36 : i32
      %101 = arith.index_cast %100 : i32 to index
      %102 = memref.load %arg2[%101] : memref<51xi32, #tpu.memory_space<smem>>
      %103 = arith.index_cast %102 : i32 to index
      %c0_37 = arith.constant 0 : index
      %104 = vector.load %arg3[%103, %c0_37] : memref<500x32xf32, #tpu.memory_space<vmem>>, vector<1x32xf32>
      %cst_38 = arith.constant 0.000000e+00 : f32
      %105 = vector.broadcast %cst_38 : f32 to vector<1x32xf32>
      %106 = arith.select %99, %104, %105 : vector<1x32xf32>
      %107 = arith.addf %97, %106 : vector<1x32xf32>
      %c2_i32_39 = arith.constant 2 : i32
      %108 = arith.addi %83, %c2_i32_39 : i32
      %109 = arith.cmpi slt, %108, %86 : i32
      %c50_i32_40 = arith.constant 50 : i32
      %110 = arith.minsi %108, %c50_i32_40 : i32
      %111 = arith.index_cast %110 : i32 to index
      %112 = memref.load %arg2[%111] : memref<51xi32, #tpu.memory_space<smem>>
      %113 = arith.index_cast %112 : i32 to index
      %c0_41 = arith.constant 0 : index
      %114 = vector.load %arg3[%113, %c0_41] : memref<500x32xf32, #tpu.memory_space<vmem>>, vector<1x32xf32>
      %cst_42 = arith.constant 0.000000e+00 : f32
      %115 = vector.broadcast %cst_42 : f32 to vector<1x32xf32>
      %116 = arith.select %109, %114, %115 : vector<1x32xf32>
      %117 = arith.addf %107, %116 : vector<1x32xf32>
      %118 = arith.index_cast %arg5 : i32 to index
      %c64 = arith.constant 64 : index
      %119 = vector.load %arg4[%118, %c64] : memref<8x128xf32, #tpu.memory_space<vmem>>, vector<1x32xf32>
      tpu.vector_store %arg4[%118, %c64], %117 {strides = array<i32>} : memref<8x128xf32, #tpu.memory_space<vmem>>, vector<1x32xf32>,
      %c24_i32 = arith.constant 24 : i32
      %120 = arith.addi %c24_i32, %2 : i32
      %121 = arith.index_cast %120 : i32 to index
      %122 = memref.load %arg1[%121] : memref<33xi32, #tpu.memory_space<smem>>
      %c1_i32_43 = arith.constant 1 : i32
      %123 = arith.addi %120, %c1_i32_43 : i32
      %124 = arith.index_cast %123 : i32 to index
      %125 = memref.load %arg1[%124] : memref<33xi32, #tpu.memory_space<smem>>
      %cst_44 = arith.constant 0.000000e+00 : f32
      %126 = vector.broadcast %cst_44 : f32 to vector<1x32xf32>
      %c0_i32_45 = arith.constant 0 : i32
      %127 = arith.addi %122, %c0_i32_45 : i32
      %128 = arith.cmpi slt, %127, %125 : i32
      %c50_i32_46 = arith.constant 50 : i32
      %129 = arith.minsi %127, %c50_i32_46 : i32
      %130 = arith.index_cast %129 : i32 to index
      %131 = memref.load %arg2[%130] : memref<51xi32, #tpu.memory_space<smem>>
      %132 = arith.index_cast %131 : i32 to index
      %c0_47 = arith.constant 0 : index
      %133 = vector.load %arg3[%132, %c0_47] : memref<500x32xf32, #tpu.memory_space<vmem>>, vector<1x32xf32>
      %cst_48 = arith.constant 0.000000e+00 : f32
      %134 = vector.broadcast %cst_48 : f32 to vector<1x32xf32>
      %135 = arith.select %128, %133, %134 : vector<1x32xf32>
      %136 = arith.addf %126, %135 : vector<1x32xf32>
      %c1_i32_49 = arith.constant 1 : i32
      %137 = arith.addi %122, %c1_i32_49 : i32
      %138 = arith.cmpi slt, %137, %125 : i32
      %c50_i32_50 = arith.constant 50 : i32
      %139 = arith.minsi %137, %c50_i32_50 : i32
      %140 = arith.index_cast %139 : i32 to index
      %141 = memref.load %arg2[%140] : memref<51xi32, #tpu.memory_space<smem>>
      %142 = arith.index_cast %141 : i32 to index
      %c0_51 = arith.constant 0 : index
      %143 = vector.load %arg3[%142, %c0_51] : memref<500x32xf32, #tpu.memory_space<vmem>>, vector<1x32xf32>
      %cst_52 = arith.constant 0.000000e+00 : f32
      %144 = vector.broadcast %cst_52 : f32 to vector<1x32xf32>
      %145 = arith.select %138, %143, %144 : vector<1x32xf32>
      %146 = arith.addf %136, %145 : vector<1x32xf32>
      %c2_i32_53 = arith.constant 2 : i32
      %147 = arith.addi %122, %c2_i32_53 : i32
      %148 = arith.cmpi slt, %147, %125 : i32
      %c50_i32_54 = arith.constant 50 : i32
      %149 = arith.minsi %147, %c50_i32_54 : i32
      %150 = arith.index_cast %149 : i32 to index
      %151 = memref.load %arg2[%150] : memref<51xi32, #tpu.memory_space<smem>>
      %152 = arith.index_cast %151 : i32 to index
      %c0_55 = arith.constant 0 : index
      %153 = vector.load %arg3[%152, %c0_55] : memref<500x32xf32, #tpu.memory_space<vmem>>, vector<1x32xf32>
      %cst_56 = arith.constant 0.000000e+00 : f32
      %154 = vector.broadcast %cst_56 : f32 to vector<1x32xf32>
      %155 = arith.select %148, %153, %154 : vector<1x32xf32>
      %156 = arith.addf %146, %155 : vector<1x32xf32>
      %157 = arith.index_cast %arg5 : i32 to index
      %c96 = arith.constant 96 : index
      %158 = vector.load %arg4[%157, %c96] : memref<8x128xf32, #tpu.memory_space<vmem>>, vector<1x32xf32>
      tpu.vector_store %arg4[%157, %c96], %156 {strides = array<i32>} : memref<8x128xf32, #tpu.memory_space<vmem>>, vector<1x32xf32>,
    }
    %c8_i32_1 = arith.constant 8 : i32
    return
  }
  func.func @transform_0(%arg0: i32, %arg1: memref<33xi32, #tpu.memory_space<smem>>, %arg2: memref<51xi32, #tpu.memory_space<smem>>) -> (i32, i32) {
    %c0_i32 = arith.constant 0 : i32
    %c0_i32_0 = arith.constant 0 : i32
    %c0_i32_1 = arith.constant 0 : i32
    return %c0_i32, %c0_i32_0 : i32, i32
  }
  func.func @transform_1(%arg0: i32, %arg1: memref<33xi32, #tpu.memory_space<smem>>, %arg2: memref<51xi32, #tpu.memory_space<smem>>) -> (i32, i32) {
    %c0_i32 = arith.constant 0 : i32
    %c0_i32_0 = arith.constant 0 : i32
    return %arg0, %c0_i32 : i32, i32
  }
}

</mosaic_0001>

<llo_original>
// kernel: tpu_custom_call.1
$region0: #{tpu_custom_call.1}
  #allocation0 [shape = 'u32[]', space=smem, size = 0x4, offset = 0x4, fixed_abs, tag = 'smem constant byte address 0x4 - core index']
  #allocation1 [shape = 'u32[144,128]{1,0:T(1,128)}', space=vmem, size = 0x12000, scoped, tag = 'internal scratch']
  #allocation2 [shape = 's32[1]{0}', space=sflag, size = 0x4, scoped, tag = 'scoped memory for tpu_custom_call.1']
  #allocation3 [shape = 'u8[512]{0}', space=smem, size = 0x200, scoped, tag = 'prefetched SMEM operand 0']
  #allocation4 [shape = 'u8[512]{0}', space=smem, size = 0x200, scoped, tag = 'prefetched SMEM operand 1']
  %s0 = inlined_call_operand.vmem [shape: s32[33], index: 0, kind: input, shape index: {}]
  %s1 = inlined_call_operand.vmem [shape: s32[51], index: 1, kind: input, shape index: {}]
  %s2 = inlined_call_operand.vmem [shape: f32[500,32], index: 2, kind: input, shape index: {}]
  %s3 = inlined_call_operand.hbm [shape: f32[8,128], index: 3, kind: output, shape index: {}]
  %s4 = sld [smem:[#allocation0]]
  $region21: #{tpu_custom_call.1} parent=0
    _
  %s6 = ssub.s32 1, %s4
  %s7 = scalar_select 0, %s6, %s4
  %s8 = sshll.u32 %s0, 4
  %s9 = int_to_ptr.vmem [resolvable:$true] %s8
  %11 = dma.vmem_to_smem %s9, 16, [#allocation3], [#allocation2]
  %s12 = sshll.u32 %s1, 4
  %s13 = int_to_ptr.vmem [resolvable:$true] %s12
  %15 = dma.vmem_to_smem %s13, 16, [#allocation4], [#allocation2]
  %16 = dma.done [#allocation2], 32
  %17 = sfence
  $region1: #{tpu_custom_call.1} parent=0
    #allocation5 [shape = 'u8[4096]{0}', space=vmem, size = 0x1000, scoped, tag = 'output window, operand 0, single buffered']
    #allocation6 [shape = 's32[1]{0}', space=sflag, size = 0x4, scoped, tag = 'scoped memory for tpu_custom_call.1']
    %18 = vsyncpa [#allocation6], 0
    // Predicated region
    $region2: #{tpu_custom_call.1} parent=1 // pred_check
      _
    $region3: #{tpu_custom_call.1} parent=1 // pred_check_branch
      %20 = sbr.rel (0) target = $region5
    $region4: #{tpu_custom_call.1} parent=1 // pred_region
      _
    $region5: #{tpu_custom_call.1} parent=1 // pred_fallthru
      _
    %s21 = smul.u32 0, 8
    loop: start=0, step=1, limit=8
    $region6: #{tpu_custom_call.1} parent=1 // loop_pre_header
      _
    $region7: #{tpu_custom_call.1} parent=1 // loop_header
      %s23 = sphi 0, %s27
      %p24 = scmp.ge.s32.totalorder %s23, 8
    $region8: #{tpu_custom_call.1} parent=1 // loop_header_branch
      %26 = sbr.rel (%p24) target = $region12
    $region9: #{tpu_custom_call.1} parent=1 // loop_body
      %s28 = sadd.s32 %s21, %s23
      %s29 = sld [smem:[#allocation3 + %s28]]
      %s30 = sadd.s32 %s28, 1
      %s31 = sld [smem:[#allocation3 + %s30]]
      %p32 = scmp.lt.s32.totalorder %s29, %s31
      %p33 = scmp.lt.s32.totalorder %s29, 50
      %s34 = scalar_select %p33, %s29, 50
      %s35 = sld [smem:[#allocation4 + %s34]]
      %s36 = scalar_lea.vmem %s2, %s35
      %v37 = vld [vmem:[%s36] sm:$0x1]
      %s38 = scalar_select %p32, 1, 0
      %v39 = vstv %s38
      %vm40 = vcmp.eq.s32.totalorder %v39, 1
      %v41 = vsel %vm40, %v37, 0.0
      %v42 = vadd.f32 %v41, 0.0
      %s43 = sadd.s32 %s29, 1
      %p44 = scmp.lt.s32.totalorder %s43, %s31
      %p45 = scmp.lt.s32.totalorder %s43, 50
      %s46 = scalar_select %p45, %s43, 50
      %s47 = sld [smem:[#allocation4 + %s46]]
      %s48 = scalar_lea.vmem %s2, %s47
      %v49 = vld [vmem:[%s48] sm:$0x1]
      %s50 = scalar_select %p44, 1, 0
      %v51 = vstv %s50
      %vm52 = vcmp.eq.s32.totalorder %v51, 1
      %v53 = vsel %vm52, %v49, 0.0
      %v54 = vadd.f32 %v42, %v53
      %s55 = sadd.s32 %s29, 2
      %p56 = scmp.lt.s32.totalorder %s55, %s31
      %p57 = scmp.lt.s32.totalorder %s55, 50
      %s58 = scalar_select %p57, %s55, 50
      %s59 = sld [smem:[#allocation4 + %s58]]
      %s60 = scalar_lea.vmem %s2, %s59
      %v61 = vld [vmem:[%s60] sm:$0x1]
      %s62 = scalar_select %p56, 1, 0
      %v63 = vstv %s62
      %vm64 = vcmp.eq.s32.totalorder %v63, 1
      %v65 = vsel %vm64, %v61, 0.0
      %v66 = vadd.f32 %v54, %v65
      %s67 = scalar_lea.vmem [#allocation5], %s23
      %vm68 = vcmask 253952
      %69 = vst.msk [vmem:[%s67] sm:$0x1] %vm68, %v66
      %s70 = sadd.s32 %s28, 8
      %s71 = sld [smem:[#allocation3 + %s70]]
      %s72 = sadd.s32 %s28, 9
      %s73 = sld [smem:[#allocation3 + %s72]]
      %p74 = scmp.lt.s32.totalorder %s71, %s73
      %p75 = scmp.lt.s32.totalorder %s71, 50
      %s76 = scalar_select %p75, %s71, 50
      %s77 = sld [smem:[#allocation4 + %s76]]
      %s78 = scalar_lea.vmem %s2, %s77
      %v79 = vld [vmem:[%s78] sm:$0x1]
      %s80 = scalar_select %p74, 1, 0
      %v81 = vstv %s80
      %vm82 = vcmp.eq.s32.totalorder %v81, 1
      %v83 = vsel %vm82, %v79, 0.0
      %v84 = vadd.f32 %v83, 0.0
      %s85 = sadd.s32 %s71, 1
      %p86 = scmp.lt.s32.totalorder %s85, %s73
      %p87 = scmp.lt.s32.totalorder %s85, 50
      %s88 = scalar_select %p87, %s85, 50
      %s89 = sld [smem:[#allocation4 + %s88]]
      %s90 = scalar_lea.vmem %s2, %s89
      %v91 = vld [vmem:[%s90] sm:$0x1]
      %s92 = scalar_select %p86, 1, 0
      %v93 = vstv %s92
      %vm94 = vcmp.eq.s32.totalorder %v93, 1
      %v95 = vsel %vm94, %v91, 0.0
      %v96 = vadd.f32 %v84, %v95
      %s97 = sadd.s32 %s71, 2
      %p98 = scmp.lt.s32.totalorder %s97, %s73
      %p99 = scmp.lt.s32.totalorder %s97, 50
      %s100 = scalar_select %p99, %s97, 50
      %s101 = sld [smem:[#allocation4 + %s100]]
      %s102 = scalar_lea.vmem %s2, %s101
      %v103 = vld [vmem:[%s102] sm:$0x1]
      %s104 = scalar_select %p98, 1, 0
      %v105 = vstv %s104
      %vm106 = vcmp.eq.s32.totalorder %v105, 1
      %v107 = vsel %vm106, %v103, 0.0
      %v108 = vadd.f32 %v96, %v107
      %110 = vrot.lane.b32.xlu0 %v108, 32
      %v111 = vpop.permute.xlu0 %110
      %vm113 = vcmask 516352
      %114 = vst.msk [vmem:[%s67] sm:$0x1] %vm113, %v111
      %s115 = sadd.s32 %s28, 16
      %s116 = sld [smem:[#allocation3 + %s115]]
      %s117 = sadd.s32 %s28, 17
      %s118 = sld [smem:[#allocation3 + %s117]]
      %p119 = scmp.lt.s32.totalorder %s116, %s118
      %p120 = scmp.lt.s32.totalorder %s116, 50
      %s121 = scalar_select %p120, %s116, 50
      %s122 = sld [smem:[#allocation4 + %s121]]
      %s123 = scalar_lea.vmem %s2, %s122
      %v124 = vld [vmem:[%s123] sm:$0x1]
      %s125 = scalar_select %p119, 1, 0
      %v126 = vstv %s125
      %vm127 = vcmp.eq.s32.totalorder %v126, 1
      %v128 = vsel %vm127, %v124, 0.0
      %v129 = vadd.f32 %v128, 0.0
      %s130 = sadd.s32 %s116, 1
      %p131 = scmp.lt.s32.totalorder %s130, %s118
      %p132 = scmp.lt.s32.totalorder %s130, 50
      %s133 = scalar_select %p132, %s130, 50
      %s134 = sld [smem:[#allocation4 + %s133]]
      %s135 = scalar_lea.vmem %s2, %s134
      %v136 = vld [vmem:[%s135] sm:$0x1]
      %s137 = scalar_select %p131, 1, 0
      %v138 = vstv %s137
      %vm139 = vcmp.eq.s32.totalorder %v138, 1
      %v140 = vsel %vm139, %v136, 0.0
      %v141 = vadd.f32 %v129, %v140
      %s142 = sadd.s32 %s116, 2
      %p143 = scmp.lt.s32.totalorder %s142, %s118
      %p144 = scmp.lt.s32.totalorder %s142, 50
      %s145 = scalar_select %p144, %s142, 50
      %s146 = sld [smem:[#allocation4 + %s145]]
      %s147 = scalar_lea.vmem %s2, %s146
      %v148 = vld [vmem:[%s147] sm:$0x1]
      %s149 = scalar_select %p143, 1, 0
      %v150 = vstv %s149
      %vm151 = vcmp.eq.s32.totalorder %v150, 1
      %v152 = vsel %vm151, %v148, 0.0
      %v153 = vadd.f32 %v141, %v152
      %155 = vrot.lane.b32.xlu0 %v153, 64
      %v156 = vpop.permute.xlu0 %155
      %vm158 = vcmask 778752
      %159 = vst.msk [vmem:[%s67] sm:$0x1] %vm158, %v156
      %s160 = sadd.s32 %s28, 24
      %s161 = sld [smem:[#allocation3 + %s160]]
      %s162 = sadd.s32 %s28, 25
      %s163 = sld [smem:[#allocation3 + %s162]]
      %p164 = scmp.lt.s32.totalorder %s161, %s163
      %p165 = scmp.lt.s32.totalorder %s161, 50
      %s166 = scalar_select %p165, %s161, 50
      %s167 = sld [smem:[#allocation4 + %s166]]
      %s168 = scalar_lea.vmem %s2, %s167
      %v169 = vld [vmem:[%s168] sm:$0x1]
      %s170 = scalar_select %p164, 1, 0
      %v171 = vstv %s170
      %vm172 = vcmp.eq.s32.totalorder %v171, 1
      %v173 = vsel %vm172, %v169, 0.0
      %v174 = vadd.f32 %v173, 0.0
      %s175 = sadd.s32 %s161, 1
      %p176 = scmp.lt.s32.totalorder %s175, %s163
      %p177 = scmp.lt.s32.totalorder %s175, 50
      %s178 = scalar_select %p177, %s175, 50
      %s179 = sld [smem:[#allocation4 + %s178]]
      %s180 = scalar_lea.vmem %s2, %s179
      %v181 = vld [vmem:[%s180] sm:$0x1]
      %s182 = scalar_select %p176, 1, 0
      %v183 = vstv %s182
      %vm184 = vcmp.eq.s32.totalorder %v183, 1
      %v185 = vsel %vm184, %v181, 0.0
      %v186 = vadd.f32 %v174, %v185
      %s187 = sadd.s32 %s161, 2
      %p188 = scmp.lt.s32.totalorder %s187, %s163
      %p189 = scmp.lt.s32.totalorder %s187, 50
      %s190 = scalar_select %p189, %s187, 50
      %s191 = sld [smem:[#allocation4 + %s190]]
      %s192 = scalar_lea.vmem %s2, %s191
      %v193 = vld [vmem:[%s192] sm:$0x1]
      %s194 = scalar_select %p188, 1, 0
      %v195 = vstv %s194
      %vm196 = vcmp.eq.s32.totalorder %v195, 1
      %v197 = vsel %vm196, %v193, 0.0
      %v198 = vadd.f32 %v186, %v197
      %200 = vrot.lane.b32.xlu0 %v198, 96
      %v201 = vpop.permute.xlu0 %200
      %vm203 = vcmask 1041152
      %204 = vst.msk [vmem:[%s67] sm:$0x1] %vm203, %v201
    $region10: #{tpu_custom_call.1} parent=1 // loop_footer
      %s27 = sadd.s32 1, %s23
    $region11: #{tpu_custom_call.1} parent=1 // loop_footer_branch
      %22 = sbr.rel target = $region7
    $region12: #{tpu_custom_call.1} parent=1 // loop_exit
      _
    // Predicated region
    $region13: #{tpu_custom_call.1} parent=1 // pred_check
      _
    $region14: #{tpu_custom_call.1} parent=1 // pred_check_branch
      %206 = sbr.rel (0) target = $region16
    $region15: #{tpu_custom_call.1} parent=1 // pred_region
      %s208 = ssub.s32 128, 128
      %209 = vsyncadd [#allocation6], %s208
      %s211 = sshll.u32 [#allocation5], 4
      %s212 = int_to_ptr.vmem [resolvable:$true] %s211
      %214 = dma.vmem_to_hbm [thread:$0]  %s212, 128, %s3, [#allocation6]
    $region16: #{tpu_custom_call.1} parent=1 // pred_fallthru
      _
    // Predicated region
    $region17: #{tpu_custom_call.1} parent=1 // pred_check
      _
    $region18: #{tpu_custom_call.1} parent=1 // pred_check_branch
      %216 = sbr.rel (0) target = $region20
    $region19: #{tpu_custom_call.1} parent=1 // pred_region
      %217 = dma.done [#allocation6], 128
    $region20: #{tpu_custom_call.1} parent=1 // pred_fallthru
      _
    %218 = vsyncpa [#allocation6], 1

</llo_original>
